<compile_context>
chip_gen: v7x
topology: tpu7x:2x2x1
jax: 0.10.0
libtpu: 0.0.40
codegen_flags: <defaults>
</compile_context>

<pallas_src>
import jax
import jax.numpy as jnp
from jax.experimental import pallas as pl
from jax.experimental.pallas import tpu as pltpu


def _round_up(x, m):
    return (x + m - 1) // m * m


def _vmem_budget_bytes():
    """Per-generation VMEM budget with headroom below physical capacity
    (128 MiB on v5e/v6e, 64 MiB per TensorCore on v7x)."""
    try:
        cap = int(pltpu.get_tpu_info().vmem_capacity_bytes)
    except Exception:
        cap = 64 * 1024 * 1024  # conservative (v7x) fallback
    return max(cap - 16 * 1024 * 1024, 16 * 1024 * 1024)


def _reward_mlp_kernel(h_ref, z_ref, w1_ref, b1_ref, w2_ref, b2_ref, o_ref,
                       x_ref):
    # h_ref : [TM, Hp]        z_ref : [TM, Zp]      x_ref (scratch): [TM, Hp+Zp]
    # w1_ref: [Hp+Zp, Mp]     b1_ref: [1, Mp] (f32)
    # w2_ref: [Mp, Op]        b2_ref: [1, Op] (f32)
    # o_ref : [TM, Op]
    hp = h_ref.shape[1]
    # Fold the concat: build x = [h | z] in VMEM (static, lane-aligned slices).
    x_ref[:, :hp] = h_ref[...]
    x_ref[:, hp:] = z_ref[...]
    # Layer 1: single full-K MXU matmul with f32 accumulation.
    h1 = jnp.dot(x_ref[...], w1_ref[...], preferred_element_type=jnp.float32)
    h1 = jnp.maximum(h1 + b1_ref[...], 0.0)          # bias + ReLU on the VPU (f32)
    # Layer 2: cast activations to the weight dtype for the MXU.
    out = jnp.dot(h1.astype(w2_ref.dtype), w2_ref[...],
                  preferred_element_type=jnp.float32)
    o_ref[...] = (out + b2_ref[...]).astype(o_ref.dtype)


def init_params(key, hidden_dim, latent_dim, embedding_dim, output_dim, model_dim):
    """Deterministic synthetic init matching nn.Linear shapes (weights stored
    transposed as [in, out] so the kernel computes x @ W)."""
    input_dim = hidden_dim + embedding_dim * latent_dim
    k1, k2, k3, k4 = jax.random.split(key, 4)
    s1 = 1.0 / jnp.sqrt(input_dim)
    s2 = 1.0 / jnp.sqrt(model_dim)
    return {
        "w1": jax.random.uniform(k1, (input_dim, model_dim), jnp.float32, -s1, s1),
        "b1": jax.random.uniform(k2, (1, model_dim), jnp.float32, -s1, s1),
        "w2": jax.random.uniform(k3, (model_dim, output_dim), jnp.float32, -s2, s2),
        "b2": jax.random.uniform(k4, (1, output_dim), jnp.float32, -s2, s2),
    }


def prepare_params(params, hidden_dim, *, compute_dtype=jnp.bfloat16):
    """One-time prep (outside the hot path).

    - Splits W1 into its h / z row blocks, zero-pads each block's rows to a
      multiple of 128 (to match the lane-padded h / z activations) and merges
      them back into a single [Hp+Zp, Mp] weight so the kernel runs ONE
      layer-1 dot.
    - Pads model_dim / output_dim to multiples of 128 for lane-dense stores.
    Zero padding is exact: padded W1 rows meet zero-padded activation lanes,
    padded W1 columns produce ReLU(0)=0 activations, and the matching W2 rows
    are zero.  bf16 is a good default on every generation (v5e/v6e/v7x MXUs
    all consume bf16 natively); pass float32 for a bit-tighter path.
    """
    w1, b1, w2, b2 = params["w1"], params["b1"], params["w2"], params["b2"]
    input_dim, model_dim = w1.shape
    output_dim = w2.shape[1]
    z_dim = input_dim - hidden_dim

    hidden_dim_p = _round_up(hidden_dim, 128)
    z_dim_p = _round_up(z_dim, 128)
    model_dim_p = _round_up(model_dim, 128)
    output_dim_p = _round_up(output_dim, 128)

    w1h = jnp.pad(w1[:hidden_dim],
                  ((0, hidden_dim_p - hidden_dim), (0, model_dim_p - model_dim)))
    w1z = jnp.pad(w1[hidden_dim:],
                  ((0, z_dim_p - z_dim), (0, model_dim_p - model_dim)))
    w1_merged = jnp.concatenate([w1h, w1z], axis=0)          # [Hp+Zp, Mp]
    b1_p = jnp.pad(b1, ((0, 0), (0, model_dim_p - model_dim)))
    w2_p = jnp.pad(w2, ((0, model_dim_p - model_dim),
                        (0, output_dim_p - output_dim)))
    b2_p = jnp.pad(b2, ((0, 0), (0, output_dim_p - output_dim)))

    return {
        "w1": w1_merged.astype(compute_dtype),
        "b1": b1_p.astype(jnp.float32),   # biases stay f32 (added post-accumulation)
        "w2": w2_p.astype(compute_dtype),
        "b2": b2_p.astype(jnp.float32),
        "hidden_dim": hidden_dim,
        "hidden_dim_p": hidden_dim_p,
        "z_dim": z_dim,
        "z_dim_p": z_dim_p,
        "output_dim": output_dim,
    }


def reward_predictor_forward(h, z, prep, *, batch_tile=512):
    """h: [B, hidden_dim], z: [B, latent_dim*embedding_dim] -> r: [B, output_dim].

    For per-timestep inference, fold the time axis into the batch before
    calling (a single tiny grid step is dominated by launch + weight DMA)."""
    w1, b1, w2, b2 = prep["w1"], prep["b1"], prep["w2"], prep["b2"]
    hidden_dim, hidden_dim_p = prep["hidden_dim"], prep["hidden_dim_p"]
    z_dim, z_dim_p = prep["z_dim"], prep["z_dim_p"]
    output_dim = prep["output_dim"]
    compute_dtype = w1.dtype

    B = h.shape[0]
    assert h.shape[1] == hidden_dim and z.shape[1] == z_dim
    k_p = hidden_dim_p + z_dim_p
    model_dim_p = w1.shape[1]
    output_dim_p = w2.shape[1]

    itemsize = jnp.dtype(compute_dtype).itemsize
    out_dtype = compute_dtype                 # accumulation stays f32 in-kernel
    out_itemsize = jnp.dtype(out_dtype).itemsize

    # --- per-generation VMEM budget & batch-tile selection --------------------
    budget = _vmem_budget_bytes()
    sub = {4: 8, 2: 16, 1: 32}.get(itemsize, 8)   # sublane pack per dtype

    weight_bytes = ((k_p * model_dim_p + model_dim_p * output_dim_p) * itemsize
                    + (model_dim_p + output_dim_p) * 4)

    def footprint(tm):
        return (2 * tm * k_p * itemsize                    # h/z tiles (double-buffered)
                + 2 * tm * output_dim_p * out_itemsize     # output tile (double-buffered)
                + weight_bytes                             # W1/W2/b1/b2 (single-buffered)
                + tm * k_p * itemsize                      # x scratch
                + 2 * tm * model_dim_p * 4)                # f32 intermediates

    tm_cap = max(min(batch_tile, _round_up(B, sub)), sub)
    tm = sub
    for cand in (512, 384, 256, 128, 64, 32, 16, 8):
        if cand > tm_cap or cand % sub:
            continue
        if footprint(cand) <= budget:
            tm = cand
            break

    b_p = _round_up(B, tm)
    # Batch padding + lane padding of h/z (matches the zero rows merged into W1).
    h = jnp.pad(h, ((0, b_p - B), (0, hidden_dim_p - hidden_dim))).astype(compute_dtype)
    z = jnp.pad(z, ((0, b_p - B), (0, z_dim_p - z_dim))).astype(compute_dtype)

    grid = (b_p // tm,)

    cost = pl.CostEstimate(
        flops=2 * b_p * k_p * model_dim_p + 2 * b_p * model_dim_p * output_dim_p,
        transcendentals=0,
        bytes_accessed=(b_p * k_p * itemsize
                        + k_p * model_dim_p * itemsize
                        + model_dim_p * output_dim_p * itemsize
                        + (model_dim_p + output_dim_p) * 4
                        + b_p * output_dim_p * out_itemsize),
    )

    vmem_limit = int(min(budget, max(int(1.5 * footprint(tm)), 8 * 1024 * 1024)))

    # Megacore (v7x): only shard the batch grid across TensorCores when there
    # are enough row tiles to amortize each core fetching its own W1/W2 copy.
    semantics = ("parallel",) if grid[0] >= 4 else ("arbitrary",)

    def _run(single_buffer_weights):
        weight_kwargs = {}
        if single_buffer_weights and hasattr(pl, "Buffered"):
            # Constant-index blocks stay resident; no need for double buffers.
            weight_kwargs = dict(pipeline_mode=pl.Buffered(1))
        in_specs = [
            pl.BlockSpec((tm, hidden_dim_p), lambda i: (i, 0)),
            pl.BlockSpec((tm, z_dim_p), lambda i: (i, 0)),
            pl.BlockSpec((k_p, model_dim_p), lambda i: (0, 0), **weight_kwargs),
            pl.BlockSpec((1, model_dim_p), lambda i: (0, 0), **weight_kwargs),
            pl.BlockSpec((model_dim_p, output_dim_p), lambda i: (0, 0), **weight_kwargs),
            pl.BlockSpec((1, output_dim_p), lambda i: (0, 0), **weight_kwargs),
        ]
        return pl.pallas_call(
            _reward_mlp_kernel,
            out_shape=jax.ShapeDtypeStruct((b_p, output_dim_p), out_dtype),
            grid=grid,
            in_specs=in_specs,
            out_specs=pl.BlockSpec((tm, output_dim_p), lambda i: (i, 0)),
            scratch_shapes=[pltpu.VMEM((tm, k_p), compute_dtype)],
            compiler_params=pltpu.CompilerParams(
                dimension_semantics=semantics,
                vmem_limit_bytes=vmem_limit,
            ),
            cost_estimate=cost,
        )(h, z, w1, b1, w2, b2)

    try:
        out = _run(True)
    except Exception:
        # Fallback if single-buffered pipeline_mode is unavailable in this jax.
        out = _run(False)

    # Strip batch padding and the lane padding of the output head.
    return out[:B, :output_dim]


if __name__ == "__main__":
    # Small shapes consistent with the module's forward:
    batch = 2
    hidden_dim = 32
    latent_dim = 4
    embedding_dim = 8
    model_dim = 32
    output_dim = 8
    bins = 8  # unused in forward (kept for parity with the PyTorch __init__)

    key = jax.random.PRNGKey(0)
    kp, kh, kz = jax.random.split(key, 3)
    params = init_params(kp, hidden_dim, latent_dim, embedding_dim, output_dim,
                         model_dim)

    h = jax.random.normal(kh, (batch, hidden_dim), jnp.float32)
    z = jax.random.normal(kz, (batch, latent_dim * embedding_dim), jnp.float32)

    # Pure-JAX reference (matches the PyTorch forward).
    x = jnp.concatenate([h, z], axis=-1)
    ref = jnp.maximum(x @ params["w1"] + params["b1"], 0.0) @ params["w2"] + params["b2"]

    # f32 path (tight check).
    prep_f32 = prepare_params(params, hidden_dim, compute_dtype=jnp.float32)
    r = jax.block_until_ready(reward_predictor_forward(h, z, prep_f32))
    assert r.shape == (batch, output_dim)
    assert jnp.allclose(r, ref, atol=1e-4, rtol=1e-4)

    # bf16 matmul path with f32 accumulation (fast path on v5e/v6e/v7x MXUs).
    prep_bf16 = prepare_params(params, hidden_dim, compute_dtype=jnp.bfloat16)
    r_bf16 = jax.block_until_ready(reward_predictor_forward(h, z, prep_bf16))
    assert r_bf16.shape == (batch, output_dim)
    assert jnp.allclose(r_bf16.astype(jnp.float32), ref, atol=5e-2, rtol=5e-2)

    print("KERNEL_OK")
</pallas_src>

<mosaic_0001>
module attributes {stable_mosaic.version = 11 : i64} {
  func.func @_reward_mlp_kernel(%arg0: i32, %arg1: memref<8x128xf32, #tpu.memory_space<vmem>>, %arg2: memref<8x128xf32, #tpu.memory_space<vmem>>, %arg3: memref<256x128xf32, #tpu.memory_space<vmem>>, %arg4: memref<1x128xf32, #tpu.memory_space<vmem>>, %arg5: memref<128x128xf32, #tpu.memory_space<vmem>>, %arg6: memref<1x128xf32, #tpu.memory_space<vmem>>, %arg7: memref<8x128xf32, #tpu.memory_space<vmem>>, %arg8: memref<8x256xf32, #tpu.memory_space<vmem>>) attributes {dimension_semantics = [#tpu.dimension_semantics<arbitrary>], iteration_bounds = array<i64: 1>, scalar_prefetch = 0 : i64, scratch_operands = 1 : i64, tpu.core_type = #tpu.core_type<tc>, window_params = [{transform_indices = @transform_0, window_bounds = array<i64: 8, 128>}, {transform_indices = @transform_1, window_bounds = array<i64: 8, 128>}, {pipeline_mode = #tpu.pipeline_mode<synchronous>, transform_indices = @transform_2, window_bounds = array<i64: 256, 128>}, {pipeline_mode = #tpu.pipeline_mode<synchronous>, transform_indices = @transform_3, window_bounds = array<i64: 1, 128>}, {pipeline_mode = #tpu.pipeline_mode<synchronous>, transform_indices = @transform_4, window_bounds = array<i64: 128, 128>}, {pipeline_mode = #tpu.pipeline_mode<synchronous>, transform_indices = @transform_5, window_bounds = array<i64: 1, 128>}, {transform_indices = @transform_6, window_bounds = array<i64: 8, 128>}]} {
    %c0 = arith.constant 0 : index
    %c0_0 = arith.constant 0 : index
    %0 = vector.load %arg1[%c0, %c0_0] : memref<8x128xf32, #tpu.memory_space<vmem>>, vector<8x128xf32>
    %c0_1 = arith.constant 0 : index
    %c0_2 = arith.constant 0 : index
    %1 = vector.load %arg8[%c0_1, %c0_2] : memref<8x256xf32, #tpu.memory_space<vmem>>, vector<8x128xf32>
    tpu.vector_store %arg8[%c0_1, %c0_2], %0 {strides = array<i32>} : memref<8x256xf32, #tpu.memory_space<vmem>>, vector<8x128xf32>,
    %c0_3 = arith.constant 0 : index
    %c0_4 = arith.constant 0 : index
    %2 = vector.load %arg2[%c0_3, %c0_4] : memref<8x128xf32, #tpu.memory_space<vmem>>, vector<8x128xf32>
    %c0_5 = arith.constant 0 : index
    %c128 = arith.constant 128 : index
    %3 = vector.load %arg8[%c0_5, %c128] : memref<8x256xf32, #tpu.memory_space<vmem>>, vector<8x128xf32>
    tpu.vector_store %arg8[%c0_5, %c128], %2 {strides = array<i32>} : memref<8x256xf32, #tpu.memory_space<vmem>>, vector<8x128xf32>,
    %c0_6 = arith.constant 0 : index
    %c0_7 = arith.constant 0 : index
    %4 = vector.load %arg8[%c0_6, %c0_7] : memref<8x256xf32, #tpu.memory_space<vmem>>, vector<8x256xf32>
    %c0_8 = arith.constant 0 : index
    %c0_9 = arith.constant 0 : index
    %5 = vector.load %arg3[%c0_8, %c0_9] : memref<256x128xf32, #tpu.memory_space<vmem>>, vector<256x128xf32>
    %cst = arith.constant dense<0.000000e+00> : vector<8x128xf32>
    %6 = tpu.matmul %4, %5, %cst {dimension_numbers = #tpu.dot_dimension_numbers<[1], [0], [0], [1], [0, 0, 1, 1], [], []>} : vector<8x256xf32>, vector<256x128xf32>, vector<8x128xf32> -> vector<8x128xf32>
    %c0_10 = arith.constant 0 : index
    %c0_11 = arith.constant 0 : index
    %7 = vector.load %arg4[%c0_10, %c0_11] : memref<1x128xf32, #tpu.memory_space<vmem>>, vector<1x128xf32>
    %8 = vector.broadcast %7 : vector<1x128xf32> to vector<8x128xf32>
    %9 = arith.addf %6, %8 : vector<8x128xf32>
    %cst_12 = arith.constant 0.000000e+00 : f32
    %10 = vector.broadcast %cst_12 : f32 to vector<8x128xf32>
    %11 = arith.maximumf %9, %10 : vector<8x128xf32>
    %c0_13 = arith.constant 0 : index
    %c0_14 = arith.constant 0 : index
    %12 = vector.load %arg5[%c0_13, %c0_14] : memref<128x128xf32, #tpu.memory_space<vmem>>, vector<128x128xf32>
    %cst_15 = arith.constant dense<0.000000e+00> : vector<8x128xf32>
    %13 = tpu.matmul %11, %12, %cst_15 {dimension_numbers = #tpu.dot_dimension_numbers<[1], [0], [0], [1], [0, 0, 1, 1], [], []>} : vector<8x128xf32>, vector<128x128xf32>, vector<8x128xf32> -> vector<8x128xf32>
    %c0_16 = arith.constant 0 : index
    %c0_17 = arith.constant 0 : index
    %14 = vector.load %arg6[%c0_16, %c0_17] : memref<1x128xf32, #tpu.memory_space<vmem>>, vector<1x128xf32>
    %15 = vector.broadcast %14 : vector<1x128xf32> to vector<8x128xf32>
    %16 = arith.addf %13, %15 : vector<8x128xf32>
    %c0_18 = arith.constant 0 : index
    %c0_19 = arith.constant 0 : index
    %17 = vector.load %arg7[%c0_18, %c0_19] : memref<8x128xf32, #tpu.memory_space<vmem>>, vector<8x128xf32>
    tpu.vector_store %arg7[%c0_18, %c0_19], %16 {strides = array<i32>} : memref<8x128xf32, #tpu.memory_space<vmem>>, vector<8x128xf32>,
    return
  }
  func.func @transform_0(%arg0: i32) -> (i32, i32) {
    %c0_i32 = arith.constant 0 : i32
    %c0_i32_0 = arith.constant 0 : i32
    return %arg0, %c0_i32 : i32, i32
  }
  func.func @transform_1(%arg0: i32) -> (i32, i32) {
    %c0_i32 = arith.constant 0 : i32
    %c0_i32_0 = arith.constant 0 : i32
    return %arg0, %c0_i32 : i32, i32
  }
  func.func @transform_2(%arg0: i32) -> (i32, i32) {
    %c0_i32 = arith.constant 0 : i32
    %c0_i32_0 = arith.constant 0 : i32
    %c0_i32_1 = arith.constant 0 : i32
    return %c0_i32, %c0_i32_0 : i32, i32
  }
  func.func @transform_3(%arg0: i32) -> (i32, i32) {
    %c0_i32 = arith.constant 0 : i32
    %c0_i32_0 = arith.constant 0 : i32
    %c0_i32_1 = arith.constant 0 : i32
    return %c0_i32, %c0_i32_0 : i32, i32
  }
  func.func @transform_4(%arg0: i32) -> (i32, i32) {
    %c0_i32 = arith.constant 0 : i32
    %c0_i32_0 = arith.constant 0 : i32
    %c0_i32_1 = arith.constant 0 : i32
    return %c0_i32, %c0_i32_0 : i32, i32
  }
  func.func @transform_5(%arg0: i32) -> (i32, i32) {
    %c0_i32 = arith.constant 0 : i32
    %c0_i32_0 = arith.constant 0 : i32
    %c0_i32_1 = arith.constant 0 : i32
    return %c0_i32, %c0_i32_0 : i32, i32
  }
  func.func @transform_6(%arg0: i32) -> (i32, i32) {
    %c0_i32 = arith.constant 0 : i32
    %c0_i32_0 = arith.constant 0 : i32
    return %arg0, %c0_i32 : i32, i32
  }
}

module attributes {stable_mosaic.version = 11 : i64} {
  func.func @_reward_mlp_kernel(%arg0: i32, %arg1: memref<8x128xf32, #tpu.memory_space<vmem>>, %arg2: memref<8x128xf32, #tpu.memory_space<vmem>>, %arg3: memref<256x128xf32, #tpu.memory_space<vmem>>, %arg4: memref<1x128xf32, #tpu.memory_space<vmem>>, %arg5: memref<128x128xf32, #tpu.memory_space<vmem>>, %arg6: memref<1x128xf32, #tpu.memory_space<vmem>>, %arg7: memref<8x128xf32, #tpu.memory_space<vmem>>, %arg8: memref<8x256xf32, #tpu.memory_space<vmem>>) attributes {dimension_semantics = [#tpu.dimension_semantics<arbitrary>], iteration_bounds = array<i64: 1>, scalar_prefetch = 0 : i64, scratch_operands = 1 : i64, tpu.core_type = #tpu.core_type<tc>, window_params = [{transform_indices = @transform_0, window_bounds = array<i64: 8, 128>}, {transform_indices = @transform_1, window_bounds = array<i64: 8, 128>}, {pipeline_mode = #tpu.pipeline_mode<synchronous>, transform_indices = @transform_2, window_bounds = array<i64: 256, 128>}, {pipeline_mode = #tpu.pipeline_mode<synchronous>, transform_indices = @transform_3, window_bounds = array<i64: 1, 128>}, {pipeline_mode = #tpu.pipeline_mode<synchronous>, transform_indices = @transform_4, window_bounds = array<i64: 128, 128>}, {pipeline_mode = #tpu.pipeline_mode<synchronous>, transform_indices = @transform_5, window_bounds = array<i64: 1, 128>}, {transform_indices = @transform_6, window_bounds = array<i64: 8, 128>}]} {
    %c0 = arith.constant 0 : index
    %c0_0 = arith.constant 0 : index
    %0 = vector.load %arg1[%c0, %c0_0] : memref<8x128xf32, #tpu.memory_space<vmem>>, vector<8x128xf32>
    %c0_1 = arith.constant 0 : index
    %c0_2 = arith.constant 0 : index
    %1 = vector.load %arg8[%c0_1, %c0_2] : memref<8x256xf32, #tpu.memory_space<vmem>>, vector<8x128xf32>
    tpu.vector_store %arg8[%c0_1, %c0_2], %0 {strides = array<i32>} : memref<8x256xf32, #tpu.memory_space<vmem>>, vector<8x128xf32>,
    %c0_3 = arith.constant 0 : index
    %c0_4 = arith.constant 0 : index
    %2 = vector.load %arg2[%c0_3, %c0_4] : memref<8x128xf32, #tpu.memory_space<vmem>>, vector<8x128xf32>
    %c0_5 = arith.constant 0 : index
    %c128 = arith.constant 128 : index
    %3 = vector.load %arg8[%c0_5, %c128] : memref<8x256xf32, #tpu.memory_space<vmem>>, vector<8x128xf32>
    tpu.vector_store %arg8[%c0_5, %c128], %2 {strides = array<i32>} : memref<8x256xf32, #tpu.memory_space<vmem>>, vector<8x128xf32>,
    %c0_6 = arith.constant 0 : index
    %c0_7 = arith.constant 0 : index
    %4 = vector.load %arg8[%c0_6, %c0_7] : memref<8x256xf32, #tpu.memory_space<vmem>>, vector<8x256xf32>
    %c0_8 = arith.constant 0 : index
    %c0_9 = arith.constant 0 : index
    %5 = vector.load %arg3[%c0_8, %c0_9] : memref<256x128xf32, #tpu.memory_space<vmem>>, vector<256x128xf32>
    %cst = arith.constant dense<0.000000e+00> : vector<8x128xf32>
    %6 = tpu.matmul %4, %5, %cst {dimension_numbers = #tpu.dot_dimension_numbers<[1], [0], [0], [1], [0, 0, 1, 1], [], []>} : vector<8x256xf32>, vector<256x128xf32>, vector<8x128xf32> -> vector<8x128xf32>
    %c0_10 = arith.constant 0 : index
    %c0_11 = arith.constant 0 : index
    %7 = vector.load %arg4[%c0_10, %c0_11] : memref<1x128xf32, #tpu.memory_space<vmem>>, vector<1x128xf32>
    %8 = vector.broadcast %7 : vector<1x128xf32> to vector<8x128xf32>
    %9 = arith.addf %6, %8 : vector<8x128xf32>
    %cst_12 = arith.constant 0.000000e+00 : f32
    %10 = vector.broadcast %cst_12 : f32 to vector<8x128xf32>
    %11 = arith.maximumf %9, %10 : vector<8x128xf32>
    %c0_13 = arith.constant 0 : index
    %c0_14 = arith.constant 0 : index
    %12 = vector.load %arg5[%c0_13, %c0_14] : memref<128x128xf32, #tpu.memory_space<vmem>>, vector<128x128xf32>
    %cst_15 = arith.constant dense<0.000000e+00> : vector<8x128xf32>
    %13 = tpu.matmul %11, %12, %cst_15 {dimension_numbers = #tpu.dot_dimension_numbers<[1], [0], [0], [1], [0, 0, 1, 1], [], []>} : vector<8x128xf32>, vector<128x128xf32>, vector<8x128xf32> -> vector<8x128xf32>
    %c0_16 = arith.constant 0 : index
    %c0_17 = arith.constant 0 : index
    %14 = vector.load %arg6[%c0_16, %c0_17] : memref<1x128xf32, #tpu.memory_space<vmem>>, vector<1x128xf32>
    %15 = vector.broadcast %14 : vector<1x128xf32> to vector<8x128xf32>
    %16 = arith.addf %13, %15 : vector<8x128xf32>
    %c0_18 = arith.constant 0 : index
    %c0_19 = arith.constant 0 : index
    %17 = vector.load %arg7[%c0_18, %c0_19] : memref<8x128xf32, #tpu.memory_space<vmem>>, vector<8x128xf32>
    tpu.vector_store %arg7[%c0_18, %c0_19], %16 {strides = array<i32>} : memref<8x128xf32, #tpu.memory_space<vmem>>, vector<8x128xf32>,
    return
  }
  func.func @transform_0(%arg0: i32) -> (i32, i32) {
    %c0_i32 = arith.constant 0 : i32
    %c0_i32_0 = arith.constant 0 : i32
    return %arg0, %c0_i32 : i32, i32
  }
  func.func @transform_1(%arg0: i32) -> (i32, i32) {
    %c0_i32 = arith.constant 0 : i32
    %c0_i32_0 = arith.constant 0 : i32
    return %arg0, %c0_i32 : i32, i32
  }
  func.func @transform_2(%arg0: i32) -> (i32, i32) {
    %c0_i32 = arith.constant 0 : i32
    %c0_i32_0 = arith.constant 0 : i32
    %c0_i32_1 = arith.constant 0 : i32
    return %c0_i32, %c0_i32_0 : i32, i32
  }
  func.func @transform_3(%arg0: i32) -> (i32, i32) {
    %c0_i32 = arith.constant 0 : i32
    %c0_i32_0 = arith.constant 0 : i32
    %c0_i32_1 = arith.constant 0 : i32
    return %c0_i32, %c0_i32_0 : i32, i32
  }
  func.func @transform_4(%arg0: i32) -> (i32, i32) {
    %c0_i32 = arith.constant 0 : i32
    %c0_i32_0 = arith.constant 0 : i32
    %c0_i32_1 = arith.constant 0 : i32
    return %c0_i32, %c0_i32_0 : i32, i32
  }
  func.func @transform_5(%arg0: i32) -> (i32, i32) {
    %c0_i32 = arith.constant 0 : i32
    %c0_i32_0 = arith.constant 0 : i32
    %c0_i32_1 = arith.constant 0 : i32
    return %c0_i32, %c0_i32_0 : i32, i32
  }
  func.func @transform_6(%arg0: i32) -> (i32, i32) {
    %c0_i32 = arith.constant 0 : i32
    %c0_i32_0 = arith.constant 0 : i32
    return %arg0, %c0_i32 : i32, i32
  }
}

</mosaic_0001>

<llo_original>
// kernel: tpu_custom_call.1
$region0: #{tpu_custom_call.1}
  #allocation0 [shape = 'u32[]', space=smem, size = 0x4, offset = 0x4, fixed_abs, tag = 'smem constant byte address 0x4 - core index']
  #allocation1 [shape = 'u32[144,128]{1,0:T(1,128)}', space=vmem, size = 0x12000, scoped, tag = 'internal scratch']
  #allocation2 [shape = 'f32[8,256]{1,0:T(8,128)}', space=vmem, size = 0x2000, scoped, tag = 'scratch operand']
  %s0 = inlined_call_operand.hbm [shape: f32[8,128], index: 0, kind: input, shape index: {}]
  %s1 = inlined_call_operand.hbm [shape: f32[8,128], index: 1, kind: input, shape index: {}]
  %s2 = inlined_call_operand.hbm [shape: f32[256,128], index: 2, kind: input, shape index: {}]
  %s3 = inlined_call_operand.vmem [shape: f32[1,128], index: 3, kind: input, shape index: {}]
  %s4 = inlined_call_operand.hbm [shape: f32[128,128], index: 4, kind: input, shape index: {}]
  %s5 = inlined_call_operand.vmem [shape: f32[1,128], index: 5, kind: input, shape index: {}]
  %s6 = inlined_call_operand.hbm [shape: f32[8,128], index: 6, kind: output, shape index: {}]
  %s7 = sld [smem:[#allocation0]]
  $region50: #{tpu_custom_call.1} parent=0
    _
  %s9 = ssub.s32 1, %s7
  %s10 = scalar_select 0, %s9, %s7
  $region1: #{tpu_custom_call.1} parent=0
    #allocation3 [shape = 'u8[4096]{0}', space=vmem, size = 0x1000, scoped, tag = 'input window, operand 0, single buffered']
    #allocation4 [shape = 's32[1]{0}', space=sflag, size = 0x4, scoped, tag = 'scoped memory for tpu_custom_call.1']
    #allocation5 [shape = 's32[1]{0}', space=sflag, size = 0x4, scoped, tag = 'scoped memory for tpu_custom_call.1']
    #allocation6 [shape = 'u8[4096]{0}', space=vmem, size = 0x1000, scoped, tag = 'input window, operand 1, single buffered']
    #allocation7 [shape = 's32[1]{0}', space=sflag, size = 0x4, scoped, tag = 'scoped memory for tpu_custom_call.1']
    #allocation8 [shape = 'u8[131072]{0}', space=vmem, size = 0x20000, scoped, tag = 'input window, operand 2, single buffered']
    #allocation9 [shape = 'u8[65536]{0}', space=vmem, size = 0x10000, scoped, tag = 'input window, operand 4, single buffered']
    #allocation10 [shape = 's32[1]{0}', space=sflag, size = 0x4, scoped, tag = 'scoped memory for tpu_custom_call.1']
    #allocation11 [shape = 'u8[4096]{0}', space=vmem, size = 0x1000, scoped, tag = 'output window, operand 0, single buffered']
    %11 = vsyncpa [#allocation4], 0
    %12 = vsyncpa [#allocation7], 0
    %13 = vsyncpa [#allocation10], 0
    %14 = vsyncpa [#allocation5], 0
    // Predicated region
    $region2: #{tpu_custom_call.1} parent=1 // pred_check
      _
    $region3: #{tpu_custom_call.1} parent=1 // pred_check_branch
      %16 = sbr.rel (0) target = $region5
    $region4: #{tpu_custom_call.1} parent=1 // pred_region
      %s18 = ssub.s32 128, 128
      %19 = vsyncadd [#allocation4], %s18
      %s21 = sshll.u32 [#allocation3], 4
      %s22 = int_to_ptr.vmem [resolvable:$true] %s21
      %24 = dma.hbm_to_vmem [thread:$0]  %s0, 128, %s22, [#allocation4]
    $region5: #{tpu_custom_call.1} parent=1 // pred_fallthru
      _
    // Predicated region
    $region6: #{tpu_custom_call.1} parent=1 // pred_check
      _
    $region7: #{tpu_custom_call.1} parent=1 // pred_check_branch
      %26 = sbr.rel (0) target = $region9
    $region8: #{tpu_custom_call.1} parent=1 // pred_region
      %s28 = ssub.s32 128, 128
      %29 = vsyncadd [#allocation7], %s28
      %s31 = sshll.u32 [#allocation6], 4
      %s32 = int_to_ptr.vmem [resolvable:$true] %s31
      %34 = dma.hbm_to_vmem [thread:$0]  %s1, 128, %s32, [#allocation7]
    $region9: #{tpu_custom_call.1} parent=1 // pred_fallthru
      _
    // Predicated region
    $region10: #{tpu_custom_call.1} parent=1 // pred_check
      _
    $region11: #{tpu_custom_call.1} parent=1 // pred_check_branch
      %36 = sbr.rel (0) target = $region13
    $region12: #{tpu_custom_call.1} parent=1 // pred_region
      %s38 = ssub.s32 4096, 4096
      %39 = vsyncadd [#allocation7], %s38
      %s40 = sshll.u32 [#allocation8], 4
      %s41 = int_to_ptr.vmem [resolvable:$true] %s40
      %46 = dma.hbm_to_vmem [thread:$0]  %s2, 4096, %s41, [#allocation7], 128, 128, 8
    $region13: #{tpu_custom_call.1} parent=1 // pred_fallthru
      _
    // Predicated region
    $region14: #{tpu_custom_call.1} parent=1 // pred_check
      _
    $region15: #{tpu_custom_call.1} parent=1 // pred_check_branch
      %48 = sbr.rel (0) target = $region17
    $region16: #{tpu_custom_call.1} parent=1 // pred_region
      _
    $region17: #{tpu_custom_call.1} parent=1 // pred_fallthru
      _
    // Predicated region
    $region18: #{tpu_custom_call.1} parent=1 // pred_check
      _
    $region19: #{tpu_custom_call.1} parent=1 // pred_check_branch
      %50 = sbr.rel (0) target = $region21
    $region20: #{tpu_custom_call.1} parent=1 // pred_region
      %s52 = ssub.s32 2048, 2048
      %53 = vsyncadd [#allocation10], %s52
      %s54 = sshll.u32 [#allocation9], 4
      %s55 = int_to_ptr.vmem [resolvable:$true] %s54
      %60 = dma.hbm_to_vmem [thread:$0]  %s4, 2048, %s55, [#allocation10], 128, 128, 8
    $region21: #{tpu_custom_call.1} parent=1 // pred_fallthru
      _
    // Predicated region
    $region22: #{tpu_custom_call.1} parent=1 // pred_check
      _
    $region23: #{tpu_custom_call.1} parent=1 // pred_check_branch
      %62 = sbr.rel (0) target = $region25
    $region24: #{tpu_custom_call.1} parent=1 // pred_region
      _
    $region25: #{tpu_custom_call.1} parent=1 // pred_fallthru
      _
    // Predicated region
    $region26: #{tpu_custom_call.1} parent=1 // pred_check
      _
    $region27: #{tpu_custom_call.1} parent=1 // pred_check_branch
      %64 = sbr.rel (0) target = $region29
    $region28: #{tpu_custom_call.1} parent=1 // pred_region
      %65 = dma.done [#allocation4], 128
    $region29: #{tpu_custom_call.1} parent=1 // pred_fallthru
      _
    // Predicated region
    $region30: #{tpu_custom_call.1} parent=1 // pred_check
      _
    $region31: #{tpu_custom_call.1} parent=1 // pred_check_branch
      %67 = sbr.rel (0) target = $region33
    $region32: #{tpu_custom_call.1} parent=1 // pred_region
      %68 = dma.done [#allocation7], 128
    $region33: #{tpu_custom_call.1} parent=1 // pred_fallthru
      _
    // Predicated region
    $region34: #{tpu_custom_call.1} parent=1 // pred_check
      _
    $region35: #{tpu_custom_call.1} parent=1 // pred_check_branch
      %70 = sbr.rel (0) target = $region37
    $region36: #{tpu_custom_call.1} parent=1 // pred_region
      %71 = dma.done [#allocation7], 4096
    $region37: #{tpu_custom_call.1} parent=1 // pred_fallthru
      _
    // Predicated region
    $region38: #{tpu_custom_call.1} parent=1 // pred_check
      _
    $region39: #{tpu_custom_call.1} parent=1 // pred_check_branch
      %73 = sbr.rel (0) target = $region41
    $region40: #{tpu_custom_call.1} parent=1 // pred_region
      %74 = dma.done [#allocation10], 2048
    $region41: #{tpu_custom_call.1} parent=1 // pred_fallthru
      _
    %v75 = vld [vmem:[#allocation3] sm:$0xff]
    %76 = vst [vmem:[#allocation2] sm:$0xff] %v75
    %v77 = vld [vmem:[#allocation6] sm:$0xff]
    %78 = vst [vmem:[#allocation2 + $0x8] sm:$0xff] %v77
    %v79 = vld [vmem:[#allocation2] sm:$0xff]
    %v80 = vld [vmem:[#allocation2 + $0x8] sm:$0xff]
    %v81 = vld [vmem:[#allocation8] sm:$0xff]
    %v82 = vld [vmem:[#allocation8 + $0x8] sm:$0xff]
    %v83 = vld [vmem:[#allocation8 + $0x10] sm:$0xff]
    %v84 = vld [vmem:[#allocation8 + $0x18] sm:$0xff]
    %v85 = vld [vmem:[#allocation8 + $0x20] sm:$0xff]
    %v86 = vld [vmem:[#allocation8 + $0x28] sm:$0xff]
    %v87 = vld [vmem:[#allocation8 + $0x30] sm:$0xff]
    %v88 = vld [vmem:[#allocation8 + $0x38] sm:$0xff]
    %v89 = vld [vmem:[#allocation8 + $0x40] sm:$0xff]
    %v90 = vld [vmem:[#allocation8 + $0x48] sm:$0xff]
    %v91 = vld [vmem:[#allocation8 + $0x50] sm:$0xff]
    %v92 = vld [vmem:[#allocation8 + $0x58] sm:$0xff]
    %v93 = vld [vmem:[#allocation8 + $0x60] sm:$0xff]
    %v94 = vld [vmem:[#allocation8 + $0x68] sm:$0xff]
    %v95 = vld [vmem:[#allocation8 + $0x70] sm:$0xff]
    %v96 = vld [vmem:[#allocation8 + $0x78] sm:$0xff]
    %v97 = vld [vmem:[#allocation8 + $0x80] sm:$0xff]
    %v98 = vld [vmem:[#allocation8 + $0x88] sm:$0xff]
    %v99 = vld [vmem:[#allocation8 + $0x90] sm:$0xff]
    %v100 = vld [vmem:[#allocation8 + $0x98] sm:$0xff]
    %v101 = vld [vmem:[#allocation8 + $0xa0] sm:$0xff]
    %v102 = vld [vmem:[#allocation8 + $0xa8] sm:$0xff]
    %v103 = vld [vmem:[#allocation8 + $0xb0] sm:$0xff]
    %v104 = vld [vmem:[#allocation8 + $0xb8] sm:$0xff]
    %v105 = vld [vmem:[#allocation8 + $0xc0] sm:$0xff]
    %v106 = vld [vmem:[#allocation8 + $0xc8] sm:$0xff]
    %v107 = vld [vmem:[#allocation8 + $0xd0] sm:$0xff]
    %v108 = vld [vmem:[#allocation8 + $0xd8] sm:$0xff]
    %v109 = vld [vmem:[#allocation8 + $0xe0] sm:$0xff]
    %v110 = vld [vmem:[#allocation8 + $0xe8] sm:$0xff]
    %v111 = vld [vmem:[#allocation8 + $0xf0] sm:$0xff]
    %v112 = vld [vmem:[#allocation8 + $0xf8] sm:$0xff]
    %v113 = vld [vmem:[%s3] sm:$0x1]
    %v115 = vlaneseq
    %v116 = vshrl.u32 %v115, 7
    %v117 = vsub.s32 0, %v116
    %v118 = vrot.slane %v113, %v117
    %120 = vmatprep.subr.mxu0 0.0
    %121 = vmatpush1.msra.mxu0 %v81
    %122 = vmatprep.subr.mxu0 0.0
    %123 = vmatpush1.msra.mxu0 %v82
    %124 = vmatprep.subr.mxu0 0.0
    %125 = vmatpush1.msra.mxu0 %v83
    %126 = vmatprep.subr.mxu0 0.0
    %127 = vmatpush1.msra.mxu0 %v84
    %128 = vmatprep.subr.mxu0 0.0
    %129 = vmatpush1.msra.mxu0 %v85
    %130 = vmatprep.subr.mxu0 0.0
    %131 = vmatpush1.msra.mxu0 %v86
    %132 = vmatprep.subr.mxu0 0.0
    %133 = vmatpush1.msra.mxu0 %v87
    %134 = vmatprep.subr.mxu0 0.0
    %135 = vmatpush1.msra.mxu0 %v88
    %136 = vmatprep.subr.mxu0 0.0
    %137 = vmatpush1.msra.mxu0 %v89
    %138 = vmatprep.subr.mxu0 0.0
    %139 = vmatpush1.msra.mxu0 %v90
    %140 = vmatprep.subr.mxu0 0.0
    %141 = vmatpush1.msra.mxu0 %v91
    %142 = vmatprep.subr.mxu0 0.0
    %143 = vmatpush1.msra.mxu0 %v92
    %144 = vmatprep.subr.mxu0 0.0
    %145 = vmatpush1.msra.mxu0 %v93
    %146 = vmatprep.subr.mxu0 0.0
    %147 = vmatpush1.msra.mxu0 %v94
    %148 = vmatprep.subr.mxu0 0.0
    %149 = vmatpush1.msra.mxu0 %v95
    %150 = vmatprep.subr.mxu0 0.0
    %151 = vmatpush1.msra.mxu0 %v96
    %152 = vmatprep.subr.mxu0 0.0
    %153 = vmatpush1.msra.mxu0 %v97
    %154 = vmatprep.subr.mxu0 0.0
    %155 = vmatpush1.msra.mxu0 %v98
    %156 = vmatprep.subr.mxu0 0.0
    %157 = vmatpush1.msra.mxu0 %v99
    %158 = vmatprep.subr.mxu0 0.0
    %159 = vmatpush1.msra.mxu0 %v100
    %160 = vmatprep.subr.mxu0 0.0
    %161 = vmatpush1.msra.mxu0 %v101
    %162 = vmatprep.subr.mxu0 0.0
    %163 = vmatpush1.msra.mxu0 %v102
    %164 = vmatprep.subr.mxu0 0.0
    %165 = vmatpush1.msra.mxu0 %v103
    %166 = vmatprep.subr.mxu0 0.0
    %167 = vmatpush1.msra.mxu0 %v104
    %168 = vmatprep.subr.mxu0 0.0
    %169 = vmatpush1.msra.mxu0 %v105
    %170 = vmatprep.subr.mxu0 0.0
    %171 = vmatpush1.msra.mxu0 %v106
    %172 = vmatprep.subr.mxu0 0.0
    %173 = vmatpush1.msra.mxu0 %v107
    %174 = vmatprep.subr.mxu0 0.0
    %175 = vmatpush1.msra.mxu0 %v108
    %176 = vmatprep.subr.mxu0 0.0
    %177 = vmatpush1.msra.mxu0 %v109
    %178 = vmatprep.subr.mxu0 0.0
    %179 = vmatpush1.msra.mxu0 %v110
    %180 = vmatprep.subr.mxu0 0.0
    %181 = vmatpush1.msra.mxu0 %v111
    %182 = vmatprep.subr.mxu0 0.0
    %183 = vmatpush1.msra.mxu0 %v112
    %184 = vmatprep.mubr.f32.mxu0 %v80
    %185 = vmatmul.mubr.f32.gmra.mrb[0].mxu0 %v79
    %v186 = vpop.f32.mrb[0].mxu0
    %v187 = vadd.f32 %v118, %v186
    %v188 = vpop.f32.mrb[0].mxu0
    %189 = vdwg.mxu0
    %v190 = vmax.f32 %v187, 0.0
    %v191 = vld [vmem:[#allocation9] sm:$0xff]
    %v192 = vld [vmem:[#allocation9 + $0x8] sm:$0xff]
    %v193 = vld [vmem:[#allocation9 + $0x10] sm:$0xff]
    %v194 = vld [vmem:[#allocation9 + $0x18] sm:$0xff]
    %v195 = vld [vmem:[#allocation9 + $0x20] sm:$0xff]
    %v196 = vld [vmem:[#allocation9 + $0x28] sm:$0xff]
    %v197 = vld [vmem:[#allocation9 + $0x30] sm:$0xff]
    %v198 = vld [vmem:[#allocation9 + $0x38] sm:$0xff]
    %v199 = vld [vmem:[#allocation9 + $0x40] sm:$0xff]
    %v200 = vld [vmem:[#allocation9 + $0x48] sm:$0xff]
    %v201 = vld [vmem:[#allocation9 + $0x50] sm:$0xff]
    %v202 = vld [vmem:[#allocation9 + $0x58] sm:$0xff]
    %v203 = vld [vmem:[#allocation9 + $0x60] sm:$0xff]
    %v204 = vld [vmem:[#allocation9 + $0x68] sm:$0xff]
    %v205 = vld [vmem:[#allocation9 + $0x70] sm:$0xff]
    %v206 = vld [vmem:[#allocation9 + $0x78] sm:$0xff]
    %v207 = vld [vmem:[%s5] sm:$0x1]
    %v209 = vlaneseq
    %v210 = vshrl.u32 %v209, 7
    %v211 = vsub.s32 0, %v210
    %v212 = vrot.slane %v207, %v211
    %214 = vmatprep.subr.mxu0 0.0
    %215 = vmatpush1.msra.mxu0 %v191
    %216 = vmatprep.subr.mxu0 0.0
    %217 = vmatpush1.msra.mxu0 %v192
    %218 = vmatprep.subr.mxu0 0.0
    %219 = vmatpush1.msra.mxu0 %v193
    %220 = vmatprep.subr.mxu0 0.0
    %221 = vmatpush1.msra.mxu0 %v194
    %222 = vmatprep.subr.mxu0 0.0
    %223 = vmatpush1.msra.mxu0 %v195
    %224 = vmatprep.subr.mxu0 0.0
    %225 = vmatpush1.msra.mxu0 %v196
    %226 = vmatprep.subr.mxu0 0.0
    %227 = vmatpush1.msra.mxu0 %v197
    %228 = vmatprep.subr.mxu0 0.0
    %229 = vmatpush1.msra.mxu0 %v198
    %230 = vmatprep.subr.mxu0 0.0
    %231 = vmatpush1.msra.mxu0 %v199
    %232 = vmatprep.subr.mxu0 0.0
    %233 = vmatpush1.msra.mxu0 %v200
    %234 = vmatprep.subr.mxu0 0.0
    %235 = vmatpush1.msra.mxu0 %v201
    %236 = vmatprep.subr.mxu0 0.0
    %237 = vmatpush1.msra.mxu0 %v202
    %238 = vmatprep.subr.mxu0 0.0
    %239 = vmatpush1.msra.mxu0 %v203
    %240 = vmatprep.subr.mxu0 0.0
    %241 = vmatpush1.msra.mxu0 %v204
    %242 = vmatprep.subr.mxu0 0.0
    %243 = vmatpush1.msra.mxu0 %v205
    %244 = vmatprep.subr.mxu0 0.0
    %245 = vmatpush1.msra.mxu0 %v206
    %246 = vmatprep.subr.mxu0 0.0
    %247 = vmatpush1.msra.mxu0 0.0
    %248 = vmatprep.subr.mxu0 0.0
    %249 = vmatpush1.msra.mxu0 0.0
    %250 = vmatprep.subr.mxu0 0.0
    %251 = vmatpush1.msra.mxu0 0.0
    %252 = vmatprep.subr.mxu0 0.0
    %253 = vmatpush1.msra.mxu0 0.0
    %254 = vmatprep.subr.mxu0 0.0
    %255 = vmatpush1.msra.mxu0 0.0
    %256 = vmatprep.subr.mxu0 0.0
    %257 = vmatpush1.msra.mxu0 0.0
    %258 = vmatprep.subr.mxu0 0.0
    %259 = vmatpush1.msra.mxu0 0.0
    %260 = vmatprep.subr.mxu0 0.0
    %261 = vmatpush1.msra.mxu0 0.0
    %262 = vmatprep.subr.mxu0 0.0
    %263 = vmatpush1.msra.mxu0 0.0
    %264 = vmatprep.subr.mxu0 0.0
    %265 = vmatpush1.msra.mxu0 0.0
    %266 = vmatprep.subr.mxu0 0.0
    %267 = vmatpush1.msra.mxu0 0.0
    %268 = vmatprep.subr.mxu0 0.0
    %269 = vmatpush1.msra.mxu0 0.0
    %270 = vmatprep.subr.mxu0 0.0
    %271 = vmatpush1.msra.mxu0 0.0
    %272 = vmatprep.subr.mxu0 0.0
    %273 = vmatpush1.msra.mxu0 0.0
    %274 = vmatprep.subr.mxu0 0.0
    %275 = vmatpush1.msra.mxu0 0.0
    %276 = vmatprep.subr.mxu0 0.0
    %277 = vmatpush1.msra.mxu0 0.0
    %278 = vmatprep.mubr.f32.mxu0 0.0
    %279 = vmatmul.mubr.f32.gmra.mrb[0].mxu0 %v190
    %v280 = vpop.f32.mrb[0].mxu0
    %v281 = vadd.f32 %v212, %v280
    %v282 = vpop.f32.mrb[0].mxu0
    %283 = vdwg.mxu0
    %284 = vst [vmem:[#allocation11] sm:$0xff] %v281
    // Predicated region
    $region42: #{tpu_custom_call.1} parent=1 // pred_check
      _
    $region43: #{tpu_custom_call.1} parent=1 // pred_check_branch
      %286 = sbr.rel (0) target = $region45
    $region44: #{tpu_custom_call.1} parent=1 // pred_region
      %s288 = ssub.s32 128, 128
      %289 = vsyncadd [#allocation5], %s288
      %s291 = sshll.u32 [#allocation11], 4
      %s292 = int_to_ptr.vmem [resolvable:$true] %s291
      %294 = dma.vmem_to_hbm [thread:$0]  %s292, 128, %s6, [#allocation5]
    $region45: #{tpu_custom_call.1} parent=1 // pred_fallthru
      _
    // Predicated region
    $region46: #{tpu_custom_call.1} parent=1 // pred_check
      _
    $region47: #{tpu_custom_call.1} parent=1 // pred_check_branch
      %296 = sbr.rel (0) target = $region49
    $region48: #{tpu_custom_call.1} parent=1 // pred_region
      %297 = dma.done [#allocation5], 128
    $region49: #{tpu_custom_call.1} parent=1 // pred_fallthru
      _
    %298 = vsyncpa [#allocation4], 1
    %299 = vsyncpa [#allocation7], 1
    %300 = vsyncpa [#allocation10], 1
    %301 = vsyncpa [#allocation5], 1

// kernel: tpu_custom_call.1
$region0: #{tpu_custom_call.1}
  #allocation0 [shape = 'u32[]', space=smem, size = 0x4, offset = 0x4, fixed_abs, tag = 'smem constant byte address 0x4 - core index']
  #allocation1 [shape = 'u32[144,128]{1,0:T(1,128)}', space=vmem, size = 0x12000, scoped, tag = 'internal scratch']
  #allocation2 [shape = 'f32[8,256]{1,0:T(8,128)}', space=vmem, size = 0x2000, scoped, tag = 'scratch operand']
  %s0 = inlined_call_operand.hbm [shape: f32[8,128], index: 0, kind: input, shape index: {}]
  %s1 = inlined_call_operand.hbm [shape: f32[8,128], index: 1, kind: input, shape index: {}]
  %s2 = inlined_call_operand.hbm [shape: f32[256,128], index: 2, kind: input, shape index: {}]
  %s3 = inlined_call_operand.vmem [shape: f32[1,128], index: 3, kind: input, shape index: {}]
  %s4 = inlined_call_operand.hbm [shape: f32[128,128], index: 4, kind: input, shape index: {}]
  %s5 = inlined_call_operand.vmem [shape: f32[1,128], index: 5, kind: input, shape index: {}]
  %s6 = inlined_call_operand.hbm [shape: f32[8,128], index: 6, kind: output, shape index: {}]
  %s7 = sld [smem:[#allocation0]]
  $region50: #{tpu_custom_call.1} parent=0
    _
  %s9 = ssub.s32 1, %s7
  %s10 = scalar_select 0, %s9, %s7
  $region1: #{tpu_custom_call.1} parent=0
    #allocation3 [shape = 'u8[4096]{0}', space=vmem, size = 0x1000, scoped, tag = 'input window, operand 0, single buffered']
    #allocation4 [shape = 's32[1]{0}', space=sflag, size = 0x4, scoped, tag = 'scoped memory for tpu_custom_call.1']
    #allocation5 [shape = 's32[1]{0}', space=sflag, size = 0x4, scoped, tag = 'scoped memory for tpu_custom_call.1']
    #allocation6 [shape = 'u8[4096]{0}', space=vmem, size = 0x1000, scoped, tag = 'input window, operand 1, single buffered']
    #allocation7 [shape = 's32[1]{0}', space=sflag, size = 0x4, scoped, tag = 'scoped memory for tpu_custom_call.1']
    #allocation8 [shape = 'u8[131072]{0}', space=vmem, size = 0x20000, scoped, tag = 'input window, operand 2, single buffered']
    #allocation9 [shape = 'u8[65536]{0}', space=vmem, size = 0x10000, scoped, tag = 'input window, operand 4, single buffered']
    #allocation10 [shape = 's32[1]{0}', space=sflag, size = 0x4, scoped, tag = 'scoped memory for tpu_custom_call.1']
    #allocation11 [shape = 'u8[4096]{0}', space=vmem, size = 0x1000, scoped, tag = 'output window, operand 0, single buffered']
    %11 = vsyncpa [#allocation4], 0
    %12 = vsyncpa [#allocation7], 0
    %13 = vsyncpa [#allocation10], 0
    %14 = vsyncpa [#allocation5], 0
    // Predicated region
    $region2: #{tpu_custom_call.1} parent=1 // pred_check
      _
    $region3: #{tpu_custom_call.1} parent=1 // pred_check_branch
      %16 = sbr.rel (0) target = $region5
    $region4: #{tpu_custom_call.1} parent=1 // pred_region
      %s18 = ssub.s32 128, 128
      %19 = vsyncadd [#allocation4], %s18
      %s21 = sshll.u32 [#allocation3], 4
      %s22 = int_to_ptr.vmem [resolvable:$true] %s21
      %24 = dma.hbm_to_vmem [thread:$0]  %s0, 128, %s22, [#allocation4]
    $region5: #{tpu_custom_call.1} parent=1 // pred_fallthru
      _
    // Predicated region
    $region6: #{tpu_custom_call.1} parent=1 // pred_check
      _
    $region7: #{tpu_custom_call.1} parent=1 // pred_check_branch
      %26 = sbr.rel (0) target = $region9
    $region8: #{tpu_custom_call.1} parent=1 // pred_region
      %s28 = ssub.s32 128, 128
      %29 = vsyncadd [#allocation7], %s28
      %s31 = sshll.u32 [#allocation6], 4
      %s32 = int_to_ptr.vmem [resolvable:$true] %s31
      %34 = dma.hbm_to_vmem [thread:$0]  %s1, 128, %s32, [#allocation7]
    $region9: #{tpu_custom_call.1} parent=1 // pred_fallthru
      _
    // Predicated region
    $region10: #{tpu_custom_call.1} parent=1 // pred_check
      _
    $region11: #{tpu_custom_call.1} parent=1 // pred_check_branch
      %36 = sbr.rel (0) target = $region13
    $region12: #{tpu_custom_call.1} parent=1 // pred_region
      %s38 = ssub.s32 4096, 4096
      %39 = vsyncadd [#allocation7], %s38
      %s40 = sshll.u32 [#allocation8], 4
      %s41 = int_to_ptr.vmem [resolvable:$true] %s40
      %46 = dma.hbm_to_vmem [thread:$0]  %s2, 4096, %s41, [#allocation7], 128, 128, 8
    $region13: #{tpu_custom_call.1} parent=1 // pred_fallthru
      _
    // Predicated region
    $region14: #{tpu_custom_call.1} parent=1 // pred_check
      _
    $region15: #{tpu_custom_call.1} parent=1 // pred_check_branch
      %48 = sbr.rel (0) target = $region17
    $region16: #{tpu_custom_call.1} parent=1 // pred_region
      _
    $region17: #{tpu_custom_call.1} parent=1 // pred_fallthru
      _
    // Predicated region
    $region18: #{tpu_custom_call.1} parent=1 // pred_check
      _
    $region19: #{tpu_custom_call.1} parent=1 // pred_check_branch
      %50 = sbr.rel (0) target = $region21
    $region20: #{tpu_custom_call.1} parent=1 // pred_region
      %s52 = ssub.s32 2048, 2048
      %53 = vsyncadd [#allocation10], %s52
      %s54 = sshll.u32 [#allocation9], 4
      %s55 = int_to_ptr.vmem [resolvable:$true] %s54
      %60 = dma.hbm_to_vmem [thread:$0]  %s4, 2048, %s55, [#allocation10], 128, 128, 8
    $region21: #{tpu_custom_call.1} parent=1 // pred_fallthru
      _
    // Predicated region
    $region22: #{tpu_custom_call.1} parent=1 // pred_check
      _
    $region23: #{tpu_custom_call.1} parent=1 // pred_check_branch
      %62 = sbr.rel (0) target = $region25
    $region24: #{tpu_custom_call.1} parent=1 // pred_region
      _
    $region25: #{tpu_custom_call.1} parent=1 // pred_fallthru
      _
    // Predicated region
    $region26: #{tpu_custom_call.1} parent=1 // pred_check
      _
    $region27: #{tpu_custom_call.1} parent=1 // pred_check_branch
      %64 = sbr.rel (0) target = $region29
    $region28: #{tpu_custom_call.1} parent=1 // pred_region
      %65 = dma.done [#allocation4], 128
    $region29: #{tpu_custom_call.1} parent=1 // pred_fallthru
      _
    // Predicated region
    $region30: #{tpu_custom_call.1} parent=1 // pred_check
      _
    $region31: #{tpu_custom_call.1} parent=1 // pred_check_branch
      %67 = sbr.rel (0) target = $region33
    $region32: #{tpu_custom_call.1} parent=1 // pred_region
      %68 = dma.done [#allocation7], 128
    $region33: #{tpu_custom_call.1} parent=1 // pred_fallthru
      _
    // Predicated region
    $region34: #{tpu_custom_call.1} parent=1 // pred_check
      _
    $region35: #{tpu_custom_call.1} parent=1 // pred_check_branch
      %70 = sbr.rel (0) target = $region37
    $region36: #{tpu_custom_call.1} parent=1 // pred_region
      %71 = dma.done [#allocation7], 4096
    $region37: #{tpu_custom_call.1} parent=1 // pred_fallthru
      _
    // Predicated region
    $region38: #{tpu_custom_call.1} parent=1 // pred_check
      _
    $region39: #{tpu_custom_call.1} parent=1 // pred_check_branch
      %73 = sbr.rel (0) target = $region41
    $region40: #{tpu_custom_call.1} parent=1 // pred_region
      %74 = dma.done [#allocation10], 2048
    $region41: #{tpu_custom_call.1} parent=1 // pred_fallthru
      _
    %v75 = vld [vmem:[#allocation3] sm:$0xff]
    %76 = vst [vmem:[#allocation2] sm:$0xff] %v75
    %v77 = vld [vmem:[#allocation6] sm:$0xff]
    %78 = vst [vmem:[#allocation2 + $0x8] sm:$0xff] %v77
    %v79 = vld [vmem:[#allocation2] sm:$0xff]
    %v80 = vld [vmem:[#allocation2 + $0x8] sm:$0xff]
    %v81 = vld [vmem:[#allocation8] sm:$0xff]
    %v82 = vld [vmem:[#allocation8 + $0x8] sm:$0xff]
    %v83 = vld [vmem:[#allocation8 + $0x10] sm:$0xff]
    %v84 = vld [vmem:[#allocation8 + $0x18] sm:$0xff]
    %v85 = vld [vmem:[#allocation8 + $0x20] sm:$0xff]
    %v86 = vld [vmem:[#allocation8 + $0x28] sm:$0xff]
    %v87 = vld [vmem:[#allocation8 + $0x30] sm:$0xff]
    %v88 = vld [vmem:[#allocation8 + $0x38] sm:$0xff]
    %v89 = vld [vmem:[#allocation8 + $0x40] sm:$0xff]
    %v90 = vld [vmem:[#allocation8 + $0x48] sm:$0xff]
    %v91 = vld [vmem:[#allocation8 + $0x50] sm:$0xff]
    %v92 = vld [vmem:[#allocation8 + $0x58] sm:$0xff]
    %v93 = vld [vmem:[#allocation8 + $0x60] sm:$0xff]
    %v94 = vld [vmem:[#allocation8 + $0x68] sm:$0xff]
    %v95 = vld [vmem:[#allocation8 + $0x70] sm:$0xff]
    %v96 = vld [vmem:[#allocation8 + $0x78] sm:$0xff]
    %v97 = vld [vmem:[#allocation8 + $0x80] sm:$0xff]
    %v98 = vld [vmem:[#allocation8 + $0x88] sm:$0xff]
    %v99 = vld [vmem:[#allocation8 + $0x90] sm:$0xff]
    %v100 = vld [vmem:[#allocation8 + $0x98] sm:$0xff]
    %v101 = vld [vmem:[#allocation8 + $0xa0] sm:$0xff]
    %v102 = vld [vmem:[#allocation8 + $0xa8] sm:$0xff]
    %v103 = vld [vmem:[#allocation8 + $0xb0] sm:$0xff]
    %v104 = vld [vmem:[#allocation8 + $0xb8] sm:$0xff]
    %v105 = vld [vmem:[#allocation8 + $0xc0] sm:$0xff]
    %v106 = vld [vmem:[#allocation8 + $0xc8] sm:$0xff]
    %v107 = vld [vmem:[#allocation8 + $0xd0] sm:$0xff]
    %v108 = vld [vmem:[#allocation8 + $0xd8] sm:$0xff]
    %v109 = vld [vmem:[#allocation8 + $0xe0] sm:$0xff]
    %v110 = vld [vmem:[#allocation8 + $0xe8] sm:$0xff]
    %v111 = vld [vmem:[#allocation8 + $0xf0] sm:$0xff]
    %v112 = vld [vmem:[#allocation8 + $0xf8] sm:$0xff]
    %v113 = vld [vmem:[%s3] sm:$0x1]
    %v115 = vlaneseq
    %v116 = vshrl.u32 %v115, 7
    %v117 = vsub.s32 0, %v116
    %v118 = vrot.slane %v113, %v117
    %120 = vmatprep.subr.mxu0 0.0
    %121 = vmatpush1.msra.mxu0 %v81
    %122 = vmatprep.subr.mxu0 0.0
    %123 = vmatpush1.msra.mxu0 %v82
    %124 = vmatprep.subr.mxu0 0.0
    %125 = vmatpush1.msra.mxu0 %v83
    %126 = vmatprep.subr.mxu0 0.0
    %127 = vmatpush1.msra.mxu0 %v84
    %128 = vmatprep.subr.mxu0 0.0
    %129 = vmatpush1.msra.mxu0 %v85
    %130 = vmatprep.subr.mxu0 0.0
    %131 = vmatpush1.msra.mxu0 %v86
    %132 = vmatprep.subr.mxu0 0.0
    %133 = vmatpush1.msra.mxu0 %v87
    %134 = vmatprep.subr.mxu0 0.0
    %135 = vmatpush1.msra.mxu0 %v88
    %136 = vmatprep.subr.mxu0 0.0
    %137 = vmatpush1.msra.mxu0 %v89
    %138 = vmatprep.subr.mxu0 0.0
    %139 = vmatpush1.msra.mxu0 %v90
    %140 = vmatprep.subr.mxu0 0.0
    %141 = vmatpush1.msra.mxu0 %v91
    %142 = vmatprep.subr.mxu0 0.0
    %143 = vmatpush1.msra.mxu0 %v92
    %144 = vmatprep.subr.mxu0 0.0
    %145 = vmatpush1.msra.mxu0 %v93
    %146 = vmatprep.subr.mxu0 0.0
    %147 = vmatpush1.msra.mxu0 %v94
    %148 = vmatprep.subr.mxu0 0.0
    %149 = vmatpush1.msra.mxu0 %v95
    %150 = vmatprep.subr.mxu0 0.0
    %151 = vmatpush1.msra.mxu0 %v96
    %152 = vmatprep.subr.mxu0 0.0
    %153 = vmatpush1.msra.mxu0 %v97
    %154 = vmatprep.subr.mxu0 0.0
    %155 = vmatpush1.msra.mxu0 %v98
    %156 = vmatprep.subr.mxu0 0.0
    %157 = vmatpush1.msra.mxu0 %v99
    %158 = vmatprep.subr.mxu0 0.0
    %159 = vmatpush1.msra.mxu0 %v100
    %160 = vmatprep.subr.mxu0 0.0
    %161 = vmatpush1.msra.mxu0 %v101
    %162 = vmatprep.subr.mxu0 0.0
    %163 = vmatpush1.msra.mxu0 %v102
    %164 = vmatprep.subr.mxu0 0.0
    %165 = vmatpush1.msra.mxu0 %v103
    %166 = vmatprep.subr.mxu0 0.0
    %167 = vmatpush1.msra.mxu0 %v104
    %168 = vmatprep.subr.mxu0 0.0
    %169 = vmatpush1.msra.mxu0 %v105
    %170 = vmatprep.subr.mxu0 0.0
    %171 = vmatpush1.msra.mxu0 %v106
    %172 = vmatprep.subr.mxu0 0.0
    %173 = vmatpush1.msra.mxu0 %v107
    %174 = vmatprep.subr.mxu0 0.0
    %175 = vmatpush1.msra.mxu0 %v108
    %176 = vmatprep.subr.mxu0 0.0
    %177 = vmatpush1.msra.mxu0 %v109
    %178 = vmatprep.subr.mxu0 0.0
    %179 = vmatpush1.msra.mxu0 %v110
    %180 = vmatprep.subr.mxu0 0.0
    %181 = vmatpush1.msra.mxu0 %v111
    %182 = vmatprep.subr.mxu0 0.0
    %183 = vmatpush1.msra.mxu0 %v112
    %184 = vmatprep.mubr.f32.mxu0 %v80
    %185 = vmatmul.mubr.f32.gmra.mrb[0].mxu0 %v79
    %v186 = vpop.f32.mrb[0].mxu0
    %v187 = vadd.f32 %v118, %v186
    %v188 = vpop.f32.mrb[0].mxu0
    %189 = vdwg.mxu0
    %v190 = vmax.f32 %v187, 0.0
    %v191 = vld [vmem:[#allocation9] sm:$0xff]
    %v192 = vld [vmem:[#allocation9 + $0x8] sm:$0xff]
    %v193 = vld [vmem:[#allocation9 + $0x10] sm:$0xff]
    %v194 = vld [vmem:[#allocation9 + $0x18] sm:$0xff]
    %v195 = vld [vmem:[#allocation9 + $0x20] sm:$0xff]
    %v196 = vld [vmem:[#allocation9 + $0x28] sm:$0xff]
    %v197 = vld [vmem:[#allocation9 + $0x30] sm:$0xff]
    %v198 = vld [vmem:[#allocation9 + $0x38] sm:$0xff]
    %v199 = vld [vmem:[#allocation9 + $0x40] sm:$0xff]
    %v200 = vld [vmem:[#allocation9 + $0x48] sm:$0xff]
    %v201 = vld [vmem:[#allocation9 + $0x50] sm:$0xff]
    %v202 = vld [vmem:[#allocation9 + $0x58] sm:$0xff]
    %v203 = vld [vmem:[#allocation9 + $0x60] sm:$0xff]
    %v204 = vld [vmem:[#allocation9 + $0x68] sm:$0xff]
    %v205 = vld [vmem:[#allocation9 + $0x70] sm:$0xff]
    %v206 = vld [vmem:[#allocation9 + $0x78] sm:$0xff]
    %v207 = vld [vmem:[%s5] sm:$0x1]
    %v209 = vlaneseq
    %v210 = vshrl.u32 %v209, 7
    %v211 = vsub.s32 0, %v210
    %v212 = vrot.slane %v207, %v211
    %214 = vmatprep.subr.mxu0 0.0
    %215 = vmatpush1.msra.mxu0 %v191
    %216 = vmatprep.subr.mxu0 0.0
    %217 = vmatpush1.msra.mxu0 %v192
    %218 = vmatprep.subr.mxu0 0.0
    %219 = vmatpush1.msra.mxu0 %v193
    %220 = vmatprep.subr.mxu0 0.0
    %221 = vmatpush1.msra.mxu0 %v194
    %222 = vmatprep.subr.mxu0 0.0
    %223 = vmatpush1.msra.mxu0 %v195
    %224 = vmatprep.subr.mxu0 0.0
    %225 = vmatpush1.msra.mxu0 %v196
    %226 = vmatprep.subr.mxu0 0.0
    %227 = vmatpush1.msra.mxu0 %v197
    %228 = vmatprep.subr.mxu0 0.0
    %229 = vmatpush1.msra.mxu0 %v198
    %230 = vmatprep.subr.mxu0 0.0
    %231 = vmatpush1.msra.mxu0 %v199
    %232 = vmatprep.subr.mxu0 0.0
    %233 = vmatpush1.msra.mxu0 %v200
    %234 = vmatprep.subr.mxu0 0.0
    %235 = vmatpush1.msra.mxu0 %v201
    %236 = vmatprep.subr.mxu0 0.0
    %237 = vmatpush1.msra.mxu0 %v202
    %238 = vmatprep.subr.mxu0 0.0
    %239 = vmatpush1.msra.mxu0 %v203
    %240 = vmatprep.subr.mxu0 0.0
    %241 = vmatpush1.msra.mxu0 %v204
    %242 = vmatprep.subr.mxu0 0.0
    %243 = vmatpush1.msra.mxu0 %v205
    %244 = vmatprep.subr.mxu0 0.0
    %245 = vmatpush1.msra.mxu0 %v206
    %246 = vmatprep.subr.mxu0 0.0
    %247 = vmatpush1.msra.mxu0 0.0
    %248 = vmatprep.subr.mxu0 0.0
    %249 = vmatpush1.msra.mxu0 0.0
    %250 = vmatprep.subr.mxu0 0.0
    %251 = vmatpush1.msra.mxu0 0.0
    %252 = vmatprep.subr.mxu0 0.0
    %253 = vmatpush1.msra.mxu0 0.0
    %254 = vmatprep.subr.mxu0 0.0
    %255 = vmatpush1.msra.mxu0 0.0
    %256 = vmatprep.subr.mxu0 0.0
    %257 = vmatpush1.msra.mxu0 0.0
    %258 = vmatprep.subr.mxu0 0.0
    %259 = vmatpush1.msra.mxu0 0.0
    %260 = vmatprep.subr.mxu0 0.0
    %261 = vmatpush1.msra.mxu0 0.0
    %262 = vmatprep.subr.mxu0 0.0
    %263 = vmatpush1.msra.mxu0 0.0
    %264 = vmatprep.subr.mxu0 0.0
    %265 = vmatpush1.msra.mxu0 0.0
    %266 = vmatprep.subr.mxu0 0.0
    %267 = vmatpush1.msra.mxu0 0.0
    %268 = vmatprep.subr.mxu0 0.0
    %269 = vmatpush1.msra.mxu0 0.0
    %270 = vmatprep.subr.mxu0 0.0
    %271 = vmatpush1.msra.mxu0 0.0
    %272 = vmatprep.subr.mxu0 0.0
    %273 = vmatpush1.msra.mxu0 0.0
    %274 = vmatprep.subr.mxu0 0.0
    %275 = vmatpush1.msra.mxu0 0.0
    %276 = vmatprep.subr.mxu0 0.0
    %277 = vmatpush1.msra.mxu0 0.0
    %278 = vmatprep.mubr.f32.mxu0 0.0
    %279 = vmatmul.mubr.f32.gmra.mrb[0].mxu0 %v190
    %v280 = vpop.f32.mrb[0].mxu0
    %v281 = vadd.f32 %v212, %v280
    %v282 = vpop.f32.mrb[0].mxu0
    %283 = vdwg.mxu0
    %284 = vst [vmem:[#allocation11] sm:$0xff] %v281
    // Predicated region
    $region42: #{tpu_custom_call.1} parent=1 // pred_check
      _
    $region43: #{tpu_custom_call.1} parent=1 // pred_check_branch
      %286 = sbr.rel (0) target = $region45
    $region44: #{tpu_custom_call.1} parent=1 // pred_region
      %s288 = ssub.s32 128, 128
      %289 = vsyncadd [#allocation5], %s288
      %s291 = sshll.u32 [#allocation11], 4
      %s292 = int_to_ptr.vmem [resolvable:$true] %s291
      %294 = dma.vmem_to_hbm [thread:$0]  %s292, 128, %s6, [#allocation5]
    $region45: #{tpu_custom_call.1} parent=1 // pred_fallthru
      _
    // Predicated region
    $region46: #{tpu_custom_call.1} parent=1 // pred_check
      _
    $region47: #{tpu_custom_call.1} parent=1 // pred_check_branch
      %296 = sbr.rel (0) target = $region49
    $region48: #{tpu_custom_call.1} parent=1 // pred_region
      %297 = dma.done [#allocation5], 128
    $region49: #{tpu_custom_call.1} parent=1 // pred_fallthru
      _
    %298 = vsyncpa [#allocation4], 1
    %299 = vsyncpa [#allocation7], 1
    %300 = vsyncpa [#allocation10], 1
    %301 = vsyncpa [#allocation5], 1

</llo_original>
